<compile_context>
chip_gen: v7x
topology: tpu7x:2x2x1
jax: 0.10.0
libtpu: 0.0.40
codegen_flags: <defaults>
</compile_context>

<pallas_src>
import functools

import jax
import jax.numpy as jnp
from jax.experimental import pallas as pl
from jax.experimental.pallas import tpu as pltpu

LANES = 128
_TARGET_BLOCK_BYTES = 4 * 1024 * 1024   # ~4 MiB per input block (per buffer)
_VMEM_LIMIT_BYTES = 32 * 1024 * 1024    # explicit: safe on v5e/v6e/v7x


def _sublane_multiple(dtype) -> int:
    # 8 for f32, 16 for bf16, 32 for int8/fp8 (sub-32-bit packs along sublanes).
    itemsize = jnp.dtype(dtype).itemsize
    return max(8, 32 // itemsize)


def _choose_block_rows(rows: int, dtype) -> int:
    """Pick a block row count: ~4 MiB per input, sublane-aligned, >=2 grid steps."""
    sub = _sublane_multiple(dtype)
    itemsize = jnp.dtype(dtype).itemsize
    target_rows = max(sub, (_TARGET_BLOCK_BYTES // (LANES * itemsize)) // sub * sub)
    if rows <= sub:
        # Only legal block is the full dim (block == array dim); single step.
        return rows
    # At least 2 grid steps (dual-TC sharding on v7x), capped at the byte budget.
    half_rounded = ((pl.cdiv(rows, 2) + sub - 1) // sub) * sub
    return min(target_rows, half_rounded)


def _content_loss_kernel(x_ref, t_ref, part_ref, *, block_rows, valid_rows):
    # Squared difference in f32 (inputs widened in-register; works for bf16 too).
    d = x_ref[...].astype(jnp.float32) - t_ref[...].astype(jnp.float32)
    sq = d * d

    # Per-lane partial sums for this block (the tiny cross-lane reduce happens
    # once, in the wrapper, over the (n_tiles, 1, 128) partials array).
    part_ref[...] = jnp.sum(sq, axis=0).reshape(1, 1, LANES)

    # Partial last block: mask out-of-bounds rows. Static check — code is only
    # emitted when the grid doesn't evenly divide the rows — and runtime-gated
    # to the last grid step so steady-state steps pay no masking VPU work.
    if valid_rows % block_rows != 0:
        @pl.when(pl.program_id(0) == pl.num_programs(0) - 1)
        def _():
            base = pl.program_id(0) * block_rows
            row_ids = jax.lax.broadcasted_iota(jnp.int32, (block_rows, 1), 0) + base
            masked = jnp.where(row_ids < valid_rows, sq, jnp.float32(0.0))
            part_ref[...] = jnp.sum(masked, axis=0).reshape(1, 1, LANES)


def content_loss(x, target):
    """Returns (y, loss) with y == x (identity) and loss == mean((x - target)^2)."""
    assert x.shape == target.shape, "x and target must have the same shape"
    assert x.dtype == target.dtype, "x and target must have the same dtype"
    total = x.size
    if total == 0:
        # TODO(synk): PyTorch mse_loss on empty tensors yields NaN; we return 0.
        return x, jnp.float32(0.0)

    x_flat = x.reshape(-1)
    t_flat = target.reshape(-1)

    aligned = (total // LANES) * LANES

    # <128-element tail handled in plain JAX (tiny); avoids jnp.pad materializing
    # full copies of x and target in HBM.
    tail_sum = jnp.float32(0.0)
    if aligned < total:
        xt = x_flat[aligned:].astype(jnp.float32)
        tt = t_flat[aligned:].astype(jnp.float32)
        tail_sum = jnp.sum((xt - tt) * (xt - tt))

    main_sum = jnp.float32(0.0)
    if aligned > 0:
        rows = aligned // LANES
        x2d = x_flat[:aligned].reshape(rows, LANES)
        t2d = t_flat[:aligned].reshape(rows, LANES)

        block_rows = _choose_block_rows(rows, x.dtype)
        n_tiles = pl.cdiv(rows, block_rows)
        itemsize = jnp.dtype(x.dtype).itemsize

        kernel = functools.partial(
            _content_loss_kernel, block_rows=block_rows, valid_rows=rows
        )

        partials = pl.pallas_call(
            kernel,
            out_shape=jax.ShapeDtypeStruct((n_tiles, 1, LANES), jnp.float32),
            grid_spec=pltpu.PrefetchScalarGridSpec(
                num_scalar_prefetch=0,
                grid=(n_tiles,),
                in_specs=[
                    pl.BlockSpec((block_rows, LANES), lambda i: (i, 0)),
                    pl.BlockSpec((block_rows, LANES), lambda i: (i, 0)),
                ],
                out_specs=pl.BlockSpec((1, 1, LANES), lambda i: (i, 0, 0)),
            ),
            compiler_params=pltpu.CompilerParams(
                # Each grid step writes an independent partial block, so the grid
                # is fully parallel (lets v7x shard across both TensorCores).
                dimension_semantics=("parallel",),
                vmem_limit_bytes=_VMEM_LIMIT_BYTES,
            ),
            cost_estimate=pl.CostEstimate(
                flops=3 * aligned,
                transcendentals=0,
                bytes_accessed=2 * aligned * itemsize,
            ),
        )(x2d, t2d)
        main_sum = jnp.sum(partials)

    # Loss returned as float32 regardless of input dtype (matches f32 modules;
    # bf16 strict-parity callers can cast).
    loss = (main_sum + tail_sum) / jnp.float32(total)
    # ContentLoss.forward returns its input unchanged -> no kernel pass-through.
    return x, loss


if __name__ == "__main__":
    key = jax.random.PRNGKey(0)
    kx, kt = jax.random.split(key)

    # NCHW, small shapes: batch=2, channels=4, spatial=16x16
    x = jax.random.normal(kx, (2, 4, 16, 16), dtype=jnp.float32)
    target = jax.random.normal(kt, (2, 4, 16, 16), dtype=jnp.float32)

    y, loss = jax.jit(content_loss)(x, target)
    jax.block_until_ready((y, loss))

    # Reference check against plain JAX
    ref_loss = jnp.mean((x - target) ** 2)
    assert jnp.allclose(y, x), "pass-through output mismatch"
    assert jnp.allclose(loss, ref_loss, rtol=1e-5, atol=1e-6), (loss, ref_loss)

    print("KERNEL_OK")
</pallas_src>

<mosaic_0001>
module attributes {stable_mosaic.version = 11 : i64} {
  func.func @_content_loss_kernel(%arg0: i32, %arg1: memref<8x128xf32, #tpu.memory_space<vmem>>, %arg2: memref<8x128xf32, #tpu.memory_space<vmem>>, %arg3: memref<1x1x128xf32, #tpu.memory_space<vmem>>) attributes {dimension_semantics = [#tpu.dimension_semantics<parallel>], iteration_bounds = array<i64: 2>, scalar_prefetch = 0 : i64, scratch_operands = 0 : i64, tpu.core_type = #tpu.core_type<tc>, window_params = [{transform_indices = @transform_0, window_bounds = array<i64: 8, 128>}, {transform_indices = @transform_1, window_bounds = array<i64: 8, 128>}, {transform_indices = @transform_2, window_bounds = array<i64: 1, 1, 128>}]} {
    %c0 = arith.constant 0 : index
    %c0_0 = arith.constant 0 : index
    %0 = vector.load %arg1[%c0, %c0_0] : memref<8x128xf32, #tpu.memory_space<vmem>>, vector<8x128xf32>
    %c0_1 = arith.constant 0 : index
    %c0_2 = arith.constant 0 : index
    %1 = vector.load %arg2[%c0_1, %c0_2] : memref<8x128xf32, #tpu.memory_space<vmem>>, vector<8x128xf32>
    %2 = arith.subf %0, %1 : vector<8x128xf32>
    %3 = arith.mulf %2, %2 : vector<8x128xf32>
    %cst = arith.constant dense<0.000000e+00> : vector<128xf32>
    %4 = vector.multi_reduction <add>, %3, %cst [0] : vector<8x128xf32> to vector<128xf32>
    %5 = vector.shape_cast %4 : vector<128xf32> to vector<1x1x128xf32>
    %c0_3 = arith.constant 0 : index
    %c0_4 = arith.constant 0 : index
    %c0_5 = arith.constant 0 : index
    %6 = vector.load %arg3[%c0_3, %c0_4, %c0_5] : memref<1x1x128xf32, #tpu.memory_space<vmem>>, vector<1x1x128xf32>
    tpu.vector_store %arg3[%c0_3, %c0_4, %c0_5], %5 {strides = array<i32>} : memref<1x1x128xf32, #tpu.memory_space<vmem>>, vector<1x1x128xf32>,
    return
  }
  func.func @transform_0(%arg0: i32) -> (i32, i32) {
    %c0_i32 = arith.constant 0 : i32
    %c0_i32_0 = arith.constant 0 : i32
    return %arg0, %c0_i32 : i32, i32
  }
  func.func @transform_1(%arg0: i32) -> (i32, i32) {
    %c0_i32 = arith.constant 0 : i32
    %c0_i32_0 = arith.constant 0 : i32
    return %arg0, %c0_i32 : i32, i32
  }
  func.func @transform_2(%arg0: i32) -> (i32, i32, i32) {
    %c0_i32 = arith.constant 0 : i32
    %c0_i32_0 = arith.constant 0 : i32
    %c0_i32_1 = arith.constant 0 : i32
    return %arg0, %c0_i32, %c0_i32_0 : i32, i32, i32
  }
}

</mosaic_0001>

<llo_original>
// kernel: content_loss.1
$region0: #{content_loss.1}
  #allocation0 [shape = 'u32[]', space=smem, size = 0x4, offset = 0x4, fixed_abs, tag = 'smem constant byte address 0x4 - core index']
  #allocation1 [shape = 'u32[144,128]{1,0:T(1,128)}', space=vmem, size = 0x12000, scoped, tag = 'internal scratch']
  %s0 = inlined_call_operand.vmem [shape: f32[16,128], index: 0, kind: input, shape index: {}]
  %s1 = inlined_call_operand.vmem [shape: f32[16,128], index: 1, kind: input, shape index: {}]
  %s2 = inlined_call_operand.vmem [shape: f32[2,1,128], index: 2, kind: output, shape index: {}]
  %s3 = sld [smem:[#allocation0]]
  $region41: #{content_loss.1} parent=0
    _
  %s5 = ssub.s32 1, %s3
  %s6 = scalar_select 0, %s5, %s3
  loop: start=0, step=1, limit=4
  $region2: #{content_loss.1} parent=0 // loop_pre_header
    _
  $region3: #{content_loss.1} parent=0 // loop_header
    %s8 = sphi 0, %s12
    %p9 = scmp.ge.s32.totalorder %s8, 4
    %s18 = sphi 0, %s20
    %s21 = sphi 0, %s18
    %s22 = sphi 0, %s21
    %s38 = sphi 0, %s22
    %s44 = sphi 0, %s46
    %s47 = sphi 0, %s44
    %s48 = sphi 0, %s47
    %s64 = sphi 0, %s48
    %s70 = sphi 0, %s72
    %s73 = sphi 0, %s70
    %s74 = sphi 0, %s73
    %s90 = sphi 0, %s74
  $region4: #{content_loss.1} parent=0 // loop_header_branch
    %11 = sbr.rel (%p9) target = $region8
  $region5: #{content_loss.1} parent=0 // loop_body
    %s13 = ssub.s32 %s8, 1
    %s14 = ssub.s32 %s8, 2
    %s15 = sadd.s32 %s8, 1
    %s16 = ssub.s32 %s8, %s15
    %p17 = scmp.eq.s32.totalorder %s16, 0
    %s19 = sadd.s32 %s18, 1
    %s20 = scalar_select %p17, %s18, %s19
    %p23 = pneg %p17
    %p24 = scmp.eq.s32.totalorder %s8, 1
    %p25 = por %p23, %p24
    %p26 = scmp.ne.s32.totalorder %s18, %s21
    %p27 = scmp.eq.s32.totalorder %s8, 0
    %p28 = por %p26, %p27
    %p29 = scmp.ne.s32.totalorder %s18, %s21
    %p30 = scmp.eq.s32.totalorder %s13, 1
    %p31 = por %p29, %p30
    %p32 = scmp.ne.s32.totalorder %s21, %s22
    %p33 = scmp.eq.s32.totalorder %s13, 0
    %p34 = por %p32, %p33
    %p35 = scmp.ne.s32.totalorder %s21, %s22
    %p36 = scmp.eq.s32.totalorder %s14, 1
    %p37 = por %p35, %p36
    %p39 = scmp.ne.s32.totalorder %s22, %s38
    %p40 = scmp.eq.s32.totalorder %s14, 0
    %p41 = por %p39, %p40
    %s42 = ssub.s32 %s8, %s15
    %p43 = scmp.eq.s32.totalorder %s42, 0
    %s45 = sadd.s32 %s44, 1
    %s46 = scalar_select %p43, %s44, %s45
    %p49 = pneg %p43
    %p50 = scmp.eq.s32.totalorder %s8, 1
    %p51 = por %p49, %p50
    %p52 = scmp.ne.s32.totalorder %s44, %s47
    %p53 = scmp.eq.s32.totalorder %s8, 0
    %p54 = por %p52, %p53
    %p55 = scmp.ne.s32.totalorder %s44, %s47
    %p56 = scmp.eq.s32.totalorder %s13, 1
    %p57 = por %p55, %p56
    %p58 = scmp.ne.s32.totalorder %s47, %s48
    %p59 = scmp.eq.s32.totalorder %s13, 0
    %p60 = por %p58, %p59
    %p61 = scmp.ne.s32.totalorder %s47, %s48
    %p62 = scmp.eq.s32.totalorder %s14, 1
    %p63 = por %p61, %p62
    %p65 = scmp.ne.s32.totalorder %s48, %s64
    %p66 = scmp.eq.s32.totalorder %s14, 0
    %p67 = por %p65, %p66
    %s68 = ssub.s32 %s8, %s15
    %p69 = scmp.eq.s32.totalorder %s68, 0
    %s71 = sadd.s32 %s70, 1
    %s72 = scalar_select %p69, %s70, %s71
    %p75 = pneg %p69
    %p76 = scmp.eq.s32.totalorder %s8, 1
    %p77 = por %p75, %p76
    %p78 = scmp.ne.s32.totalorder %s70, %s73
    %p79 = scmp.eq.s32.totalorder %s8, 0
    %p80 = por %p78, %p79
    %p81 = scmp.ne.s32.totalorder %s70, %s73
    %p82 = scmp.eq.s32.totalorder %s13, 1
    %p83 = por %p81, %p82
    %p84 = scmp.ne.s32.totalorder %s73, %s74
    %p85 = scmp.eq.s32.totalorder %s13, 0
    %p86 = por %p84, %p85
    %p87 = scmp.ne.s32.totalorder %s73, %s74
    %p88 = scmp.eq.s32.totalorder %s14, 1
    %p89 = por %p87, %p88
    %p91 = scmp.ne.s32.totalorder %s74, %s90
    %p92 = scmp.eq.s32.totalorder %s14, 0
    %p93 = por %p91, %p92
    %p94 = scmp.le.s32.totalorder 1, %s8
    %p95 = scmp.lt.s32.totalorder %s8, 3
    %p96 = pnand %p94, %p95
    %p97 = pneg %p96
    // Predicated region
    $region9: #{content_loss.1} parent=5 // pred_check
      _
    $region10: #{content_loss.1} parent=5 // pred_check_branch
      %99 = sbr.rel (%p96) target = $region12
    $region11: #{content_loss.1} parent=5 // pred_region
      %s100 = ssub.s32 %s8, 1
    $region12: #{content_loss.1} parent=5 // pred_fallthru
      _
    %p101 = scmp.lt.s32.totalorder %s8, 2
    // Predicated region
    $region13: #{content_loss.1} parent=5 // pred_check
      %p102 = pneg %p101
    $region14: #{content_loss.1} parent=5 // pred_check_branch
      %104 = sbr.rel (%p102) target = $region16
    $region15: #{content_loss.1} parent=5 // pred_region
      // Predicated region
      $region17: #{content_loss.1} parent=15 // pred_check
        %p105 = pneg %p28
      $region18: #{content_loss.1} parent=15 // pred_check_branch
        %107 = sbr.rel (%p105) target = $region20
      $region19: #{content_loss.1} parent=15 // pred_region
        %p108 = scmp.lt.s32.totalorder %s8, 1
        %s109 = scalar_select %p108, %s8, 1
        %s110 = smul.addr %s109, 8
        %s111 = scalar_lea.vmem %s0, %s110
      $region20: #{content_loss.1} parent=15 // pred_fallthru
        _
      // Predicated region
      $region21: #{content_loss.1} parent=15 // pred_check
        %p112 = pneg %p54
      $region22: #{content_loss.1} parent=15 // pred_check_branch
        %114 = sbr.rel (%p112) target = $region24
      $region23: #{content_loss.1} parent=15 // pred_region
        %p115 = scmp.lt.s32.totalorder %s8, 1
        %s116 = scalar_select %p115, %s8, 1
        %s117 = smul.addr %s116, 8
        %s118 = scalar_lea.vmem %s1, %s117
      $region24: #{content_loss.1} parent=15 // pred_fallthru
        _
    $region16: #{content_loss.1} parent=5 // pred_fallthru
      _
    %p119 = scmp.le.s32.totalorder 1, %s8
    %p120 = scmp.lt.s32.totalorder %s8, 3
    %p121 = pnand %p119, %p120
    %p122 = pneg %p121
    // Predicated region
    $region25: #{content_loss.1} parent=5 // pred_check
      _
    $region26: #{content_loss.1} parent=5 // pred_check_branch
      %124 = sbr.rel (%p121) target = $region28
    $region27: #{content_loss.1} parent=5 // pred_region
      %s125 = ssub.s32 %s8, 1
      %p126 = scmp.lt.s32.totalorder %s13, 1
      %s127 = scalar_select %p126, %s13, 1
      %s128 = smul.addr %s127, 8
      %s129 = scalar_lea.vmem %s0, %s128
      %p130 = pneg %p34
      %p131 = pneg %p31
      %p132 = scmp.lt.s32.totalorder %s13, 1
      %s133 = scalar_select %p132, %s13, 1
      %s134 = smul.addr %s133, 8
      %s135 = scalar_lea.vmem %s1, %s134
      %p136 = pneg %p60
      %p137 = pneg %p57
      %p138 = pneg %p86
      %p139 = pneg %p83
      %p140 = scmp.lt.s32.totalorder %s13, 1
      %s141 = scalar_select %p140, %s13, 1
      %s142 = scalar_lea.vmem %s2, %s141
      %p143 = scmp.lt.s32.totalorder %s13, 1
      %s144 = scalar_select %p143, %s13, 1
      %s145 = smul.addr %s144, 8
      %s146 = scalar_lea.vmem %s0, %s145
      %p147 = scmp.lt.s32.totalorder %s13, 1
      %s148 = scalar_select %p147, %s13, 1
      %s149 = smul.addr %s148, 8
      %s150 = scalar_lea.vmem %s1, %s149
      %p151 = scmp.lt.s32.totalorder %s13, 1
      %s152 = scalar_select %p151, %s13, 1
      %s153 = scalar_lea.vmem %s2, %s152
      %v154 = vld [vmem:[%s146] sm:$0xff]
      %v155 = vld [vmem:[%s150] sm:$0xff]
      %v156 = vsub.f32 %v154, %v155
      %v157 = vmul.f32 %v156, %v156
      %v158 = vrot.slane %v157, 4
      %v159 = vadd.f32 %v157, %v158
      %v160 = vrot.slane %v159, 2
      %v161 = vadd.f32 %v159, %v160
      %v162 = vrot.slane %v161, 1
      %v163 = vadd.f32 %v161, %v162
      %164 = vst [vmem:[%s153] sm:$0x1] %v163
      %p165 = scmp.lt.s32.totalorder %s13, 1
      %s166 = scalar_select %p165, %s13, 1
      %s167 = scalar_lea.vmem %s2, %s166
      // Predicated region
      $region29: #{content_loss.1} parent=27 // pred_check
        %p168 = pneg %p83
      $region30: #{content_loss.1} parent=27 // pred_check_branch
        %170 = sbr.rel (%p168) target = $region32
      $region31: #{content_loss.1} parent=27 // pred_region
        _
      $region32: #{content_loss.1} parent=27 // pred_fallthru
        _
    $region28: #{content_loss.1} parent=5 // pred_fallthru
      _
    %p171 = scmp.le.s32.totalorder 2, %s8
    // Predicated region
    $region33: #{content_loss.1} parent=5 // pred_check
      %p172 = pneg %p171
    $region34: #{content_loss.1} parent=5 // pred_check_branch
      %174 = sbr.rel (%p172) target = $region36
    $region35: #{content_loss.1} parent=5 // pred_region
      %s175 = ssub.s32 %s8, 2
      // Predicated region
      $region37: #{content_loss.1} parent=35 // pred_check
        %p176 = pneg %p89
      $region38: #{content_loss.1} parent=35 // pred_check_branch
        %178 = sbr.rel (%p176) target = $region40
      $region39: #{content_loss.1} parent=35 // pred_region
        %p179 = scmp.lt.s32.totalorder %s14, 1
        %s180 = scalar_select %p179, %s14, 1
        %s181 = scalar_lea.vmem %s2, %s180
      $region40: #{content_loss.1} parent=35 // pred_fallthru
        _
    $region36: #{content_loss.1} parent=5 // pred_fallthru
      _
  $region6: #{content_loss.1} parent=0 // loop_footer
    %s12 = sadd.s32 1, %s8
  $region7: #{content_loss.1} parent=0 // loop_footer_branch
    %7 = sbr.rel target = $region3
  $region8: #{content_loss.1} parent=0 // loop_exit
    _

</llo_original>
